<compile_context>
chip_gen: v7x
topology: tpu7x:2x2x1
jax: 0.10.0
libtpu: 0.0.40
codegen_flags: <defaults>
</compile_context>

<pallas_src>
import math

import jax
import jax.numpy as jnp
from jax.experimental import pallas as pl
from jax.experimental.pallas import tpu as pltpu


def _round_up(x, m):
    return ((x + m - 1) // m) * m


def node_apply_kernel(h_ref, hm_ref, w1_ref, w2_ref, b_ref, o_ref):
    # y = concat([h, hm], 1) @ W + b  ==  h @ W[:in] + hm @ W[in:] + b
    acc = jnp.dot(h_ref[...], w1_ref[...], preferred_element_type=jnp.float32)
    acc = acc + jnp.dot(hm_ref[...], w2_ref[...], preferred_element_type=jnp.float32)
    acc = acc + b_ref[...]                       # f32 bias, broadcast over rows
    o_ref[...] = jnp.maximum(acc, 0.0).astype(o_ref.dtype)   # ReLU


def _vmem_bytes(tile_m, in_feats, out_feats, in_itemsize, out_itemsize):
    """Double-buffered VMEM footprint, including lane padding to 128."""
    lane = 128
    h_tile = tile_m * _round_up(in_feats, lane) * in_itemsize
    hm_tile = tile_m * _round_up(2 * in_feats, lane) * in_itemsize
    o_tile = tile_m * _round_up(out_feats, lane) * out_itemsize
    w_res = (_round_up(in_feats, 16) + _round_up(2 * in_feats, 16)) \
        * _round_up(out_feats, lane) * in_itemsize
    b_res = 8 * _round_up(out_feats, lane) * 4
    return 2 * (h_tile + hm_tile + o_tile + w_res + b_res)


def node_apply(h, hm, weight, bias, *, compute_dtype=jnp.bfloat16,
               target_step_bytes=2 * 1024 * 1024,
               vmem_budget_bytes=48 * 1024 * 1024):
    """ReLU(concat([h, hm], 1) @ weight + bias).

    h: (N, in_feats), hm: (N, 2*in_feats),
    weight: (3*in_feats, out_feats)  (transposed vs. PyTorch's (out, in)),
    bias: (out_feats,).  Returns (N, out_feats) in h.dtype.
    """
    n, in_feats = h.shape
    assert hm.shape == (n, 2 * in_feats)
    assert weight.shape[0] == 3 * in_feats
    out_feats = weight.shape[1]
    out_dtype = h.dtype

    # bf16 casts (halve input HBM traffic; accumulation stays f32 in-kernel).
    # The weight split fuses with its cast, so it costs no extra HBM traffic.
    h_c = h.astype(compute_dtype)
    hm_c = hm.astype(compute_dtype)
    w1 = weight[:in_feats, :].astype(compute_dtype)
    w2 = weight[in_feats:, :].astype(compute_dtype)
    b2d = bias.reshape(1, out_feats).astype(jnp.float32)

    in_itemsize = jnp.dtype(compute_dtype).itemsize
    out_itemsize = jnp.dtype(out_dtype).itemsize

    # --- row tile: target a fixed HBM byte budget per grid step -------------
    bytes_per_row = 3 * in_feats * in_itemsize + out_feats * out_itemsize
    tile_m = _round_up(max(target_step_bytes // max(bytes_per_row, 1), 16), 16)
    tile_m = min(tile_m, 4096)
    # Shrink until double-buffered tiles + resident weight fit the VMEM budget.
    while (_vmem_bytes(tile_m, in_feats, out_feats, in_itemsize, out_itemsize)
           > vmem_budget_bytes and tile_m > 16):
        tile_m = max(16, _round_up(tile_m // 2, 16))
    if tile_m >= n:
        # Small/medium N: one full-extent block (valid for any N, no padding).
        # Large N: keep >= 2 row tiles so both v7x TensorCores get work.
        tile_m = n if n < 512 else _round_up(pl.cdiv(n, 2), 16)

    grid = (pl.cdiv(n, tile_m),)
    vmem_need = _vmem_bytes(tile_m, in_feats, out_feats, in_itemsize, out_itemsize)
    vmem_limit = int(min(max(32 * 1024 * 1024, vmem_need + 8 * 1024 * 1024),
                         64 * 1024 * 1024))  # stay under v7x physical VMEM

    return pl.pallas_call(
        node_apply_kernel,
        out_shape=jax.ShapeDtypeStruct((n, out_feats), out_dtype),
        grid_spec=pltpu.PrefetchScalarGridSpec(
            num_scalar_prefetch=0,
            grid=grid,
            in_specs=[
                pl.BlockSpec((tile_m, in_feats), lambda i: (i, 0)),        # h rows
                pl.BlockSpec((tile_m, 2 * in_feats), lambda i: (i, 0)),    # hm rows
                pl.BlockSpec((in_feats, out_feats), lambda i: (0, 0)),     # W[:in]  (resident)
                pl.BlockSpec((2 * in_feats, out_feats), lambda i: (0, 0)), # W[in:]  (resident)
                pl.BlockSpec((1, out_feats), lambda i: (0, 0)),            # bias    (resident)
            ],
            out_specs=pl.BlockSpec((tile_m, out_feats), lambda i: (i, 0)),
        ),
        compiler_params=pltpu.CompilerParams(
            dimension_semantics=("parallel",),
            vmem_limit_bytes=vmem_limit,
        ),
    )(h_c, hm_c, w1, w2, b2d)


if __name__ == "__main__":
    # Shapes implied by the forward pass:
    #   node.data['h']  : (N, in_feats)
    #   node.data['hm'] : (N, 2*in_feats)   (so the concat has 3*in_feats cols)
    N = 8
    in_feats = 32
    out_feats = 32

    key = jax.random.PRNGKey(0)
    k_h, k_hm, k_w, k_b = jax.random.split(key, 4)

    h = jax.random.normal(k_h, (N, in_feats), dtype=jnp.float32)
    hm = jax.random.normal(k_hm, (N, 2 * in_feats), dtype=jnp.float32)

    # Deterministic nn.Linear-style init: U(-1/sqrt(fan_in), 1/sqrt(fan_in))
    fan_in = 3 * in_feats
    bound = 1.0 / math.sqrt(fan_in)
    weight = jax.random.uniform(k_w, (3 * in_feats, out_feats), dtype=jnp.float32,
                                minval=-bound, maxval=bound)
    bias = jax.random.uniform(k_b, (out_feats,), dtype=jnp.float32,
                              minval=-bound, maxval=bound)

    out = node_apply(h, hm, weight, bias)
    out = jax.block_until_ready(out)

    # References: bf16-matched (tight check of the kernel) and full-f32
    # module semantics (loose check covering the bf16 cast error).
    cat = jnp.concatenate([h, hm], axis=1)
    ref_f32 = jnp.maximum(cat @ weight + bias, 0.0)
    cat_bf = cat.astype(jnp.bfloat16).astype(jnp.float32)
    w_bf = weight.astype(jnp.bfloat16).astype(jnp.float32)
    ref_bf = jnp.maximum(cat_bf @ w_bf + bias, 0.0)

    assert out.shape == (N, out_feats)
    assert out.dtype == jnp.float32
    assert jnp.allclose(out, ref_bf, atol=1e-3, rtol=1e-3), "bf16-matched mismatch"
    assert jnp.allclose(out, ref_f32, atol=3e-2, rtol=3e-2), "f32 reference mismatch"

    print("KERNEL_OK")
</pallas_src>

<mosaic_0001>
module attributes {stable_mosaic.version = 11 : i64} {
  func.func @node_apply_kernel(%arg0: i32, %arg1: memref<8x32xbf16, #tpu.memory_space<vmem>>, %arg2: memref<8x64xbf16, #tpu.memory_space<vmem>>, %arg3: memref<32x32xbf16, #tpu.memory_space<vmem>>, %arg4: memref<64x32xbf16, #tpu.memory_space<vmem>>, %arg5: memref<1x32xf32, #tpu.memory_space<vmem>>, %arg6: memref<8x32xf32, #tpu.memory_space<vmem>>) attributes {dimension_semantics = [#tpu.dimension_semantics<parallel>], iteration_bounds = array<i64: 1>, scalar_prefetch = 0 : i64, scratch_operands = 0 : i64, tpu.core_type = #tpu.core_type<tc>, window_params = [{transform_indices = @transform_0, window_bounds = array<i64: 8, 32>}, {transform_indices = @transform_1, window_bounds = array<i64: 8, 64>}, {pipeline_mode = #tpu.pipeline_mode<synchronous>, transform_indices = @transform_2, window_bounds = array<i64: 32, 32>}, {pipeline_mode = #tpu.pipeline_mode<synchronous>, transform_indices = @transform_3, window_bounds = array<i64: 64, 32>}, {pipeline_mode = #tpu.pipeline_mode<synchronous>, transform_indices = @transform_4, window_bounds = array<i64: 1, 32>}, {transform_indices = @transform_5, window_bounds = array<i64: 8, 32>}]} {
    %c0 = arith.constant 0 : index
    %c0_0 = arith.constant 0 : index
    %0 = vector.load %arg1[%c0, %c0_0] : memref<8x32xbf16, #tpu.memory_space<vmem>>, vector<8x32xbf16>
    %c0_1 = arith.constant 0 : index
    %c0_2 = arith.constant 0 : index
    %1 = vector.load %arg3[%c0_1, %c0_2] : memref<32x32xbf16, #tpu.memory_space<vmem>>, vector<32x32xbf16>
    %cst = arith.constant dense<0.000000e+00> : vector<8x32xf32>
    %2 = tpu.matmul %0, %1, %cst {dimension_numbers = #tpu.dot_dimension_numbers<[1], [0], [0], [1], [0, 0, 1, 1], [], []>} : vector<8x32xbf16>, vector<32x32xbf16>, vector<8x32xf32> -> vector<8x32xf32>
    %c0_3 = arith.constant 0 : index
    %c0_4 = arith.constant 0 : index
    %3 = vector.load %arg2[%c0_3, %c0_4] : memref<8x64xbf16, #tpu.memory_space<vmem>>, vector<8x64xbf16>
    %c0_5 = arith.constant 0 : index
    %c0_6 = arith.constant 0 : index
    %4 = vector.load %arg4[%c0_5, %c0_6] : memref<64x32xbf16, #tpu.memory_space<vmem>>, vector<64x32xbf16>
    %cst_7 = arith.constant dense<0.000000e+00> : vector<8x32xf32>
    %5 = tpu.matmul %3, %4, %cst_7 {dimension_numbers = #tpu.dot_dimension_numbers<[1], [0], [0], [1], [0, 0, 1, 1], [], []>} : vector<8x64xbf16>, vector<64x32xbf16>, vector<8x32xf32> -> vector<8x32xf32>
    %6 = arith.addf %2, %5 : vector<8x32xf32>
    %c0_8 = arith.constant 0 : index
    %c0_9 = arith.constant 0 : index
    %7 = vector.load %arg5[%c0_8, %c0_9] : memref<1x32xf32, #tpu.memory_space<vmem>>, vector<1x32xf32>
    %8 = vector.broadcast %7 : vector<1x32xf32> to vector<8x32xf32>
    %9 = arith.addf %6, %8 : vector<8x32xf32>
    %cst_10 = arith.constant 0.000000e+00 : f32
    %10 = vector.broadcast %cst_10 : f32 to vector<8x32xf32>
    %11 = arith.maximumf %9, %10 : vector<8x32xf32>
    %c0_11 = arith.constant 0 : index
    %c0_12 = arith.constant 0 : index
    %12 = vector.load %arg6[%c0_11, %c0_12] : memref<8x32xf32, #tpu.memory_space<vmem>>, vector<8x32xf32>
    tpu.vector_store %arg6[%c0_11, %c0_12], %11 {strides = array<i32>} : memref<8x32xf32, #tpu.memory_space<vmem>>, vector<8x32xf32>,
    return
  }
  func.func @transform_0(%arg0: i32) -> (i32, i32) {
    %c0_i32 = arith.constant 0 : i32
    %c0_i32_0 = arith.constant 0 : i32
    return %arg0, %c0_i32 : i32, i32
  }
  func.func @transform_1(%arg0: i32) -> (i32, i32) {
    %c0_i32 = arith.constant 0 : i32
    %c0_i32_0 = arith.constant 0 : i32
    return %arg0, %c0_i32 : i32, i32
  }
  func.func @transform_2(%arg0: i32) -> (i32, i32) {
    %c0_i32 = arith.constant 0 : i32
    %c0_i32_0 = arith.constant 0 : i32
    %c0_i32_1 = arith.constant 0 : i32
    return %c0_i32, %c0_i32_0 : i32, i32
  }
  func.func @transform_3(%arg0: i32) -> (i32, i32) {
    %c0_i32 = arith.constant 0 : i32
    %c0_i32_0 = arith.constant 0 : i32
    %c0_i32_1 = arith.constant 0 : i32
    return %c0_i32, %c0_i32_0 : i32, i32
  }
  func.func @transform_4(%arg0: i32) -> (i32, i32) {
    %c0_i32 = arith.constant 0 : i32
    %c0_i32_0 = arith.constant 0 : i32
    %c0_i32_1 = arith.constant 0 : i32
    return %c0_i32, %c0_i32_0 : i32, i32
  }
  func.func @transform_5(%arg0: i32) -> (i32, i32) {
    %c0_i32 = arith.constant 0 : i32
    %c0_i32_0 = arith.constant 0 : i32
    return %arg0, %c0_i32 : i32, i32
  }
}

</mosaic_0001>

<llo_original>
// kernel: tpu_custom_call.1
$region0: #{tpu_custom_call.1}
  #allocation0 [shape = 'u32[]', space=smem, size = 0x4, offset = 0x4, fixed_abs, tag = 'smem constant byte address 0x4 - core index']
  #allocation1 [shape = 'u32[144,128]{1,0:T(1,128)}', space=vmem, size = 0x12000, scoped, tag = 'internal scratch']
  %s0 = inlined_call_operand.vmem [shape: bf16[8,32], index: 0, kind: input, shape index: {}]
  %s1 = inlined_call_operand.vmem [shape: bf16[8,64], index: 1, kind: input, shape index: {}]
  %s2 = inlined_call_operand.vmem [shape: bf16[32,32], index: 2, kind: input, shape index: {}]
  %s3 = inlined_call_operand.vmem [shape: bf16[64,32], index: 3, kind: input, shape index: {}]
  %s4 = inlined_call_operand.vmem [shape: f32[1,32], index: 4, kind: input, shape index: {}]
  %s5 = inlined_call_operand.hbm [shape: f32[8,32], index: 5, kind: output, shape index: {}]
  %s6 = sld [smem:[#allocation0]]
  $region30: #{tpu_custom_call.1} parent=0
    _
  %s8 = ssub.s32 1, %s6
  %s9 = scalar_select 0, %s8, %s6
  $region1: #{tpu_custom_call.1} parent=0
    #allocation2 [shape = 'u8[4096]{0}', space=vmem, size = 0x1000, scoped, tag = 'output window, operand 0, single buffered']
    #allocation3 [shape = 's32[1]{0}', space=sflag, size = 0x4, scoped, tag = 'scoped memory for tpu_custom_call.1']
    %10 = vsyncpa [#allocation3], 0
    // Predicated region
    $region2: #{tpu_custom_call.1} parent=1 // pred_check
      _
    $region3: #{tpu_custom_call.1} parent=1 // pred_check_branch
      %12 = sbr.rel (0) target = $region5
    $region4: #{tpu_custom_call.1} parent=1 // pred_region
      _
    $region5: #{tpu_custom_call.1} parent=1 // pred_fallthru
      _
    // Predicated region
    $region6: #{tpu_custom_call.1} parent=1 // pred_check
      _
    $region7: #{tpu_custom_call.1} parent=1 // pred_check_branch
      %14 = sbr.rel (0) target = $region9
    $region8: #{tpu_custom_call.1} parent=1 // pred_region
      _
    $region9: #{tpu_custom_call.1} parent=1 // pred_fallthru
      _
    // Predicated region
    $region10: #{tpu_custom_call.1} parent=1 // pred_check
      _
    $region11: #{tpu_custom_call.1} parent=1 // pred_check_branch
      %16 = sbr.rel (0) target = $region13
    $region12: #{tpu_custom_call.1} parent=1 // pred_region
      _
    $region13: #{tpu_custom_call.1} parent=1 // pred_fallthru
      _
    // Predicated region
    $region14: #{tpu_custom_call.1} parent=1 // pred_check
      _
    $region15: #{tpu_custom_call.1} parent=1 // pred_check_branch
      %18 = sbr.rel (0) target = $region17
    $region16: #{tpu_custom_call.1} parent=1 // pred_region
      _
    $region17: #{tpu_custom_call.1} parent=1 // pred_fallthru
      _
    // Predicated region
    $region18: #{tpu_custom_call.1} parent=1 // pred_check
      _
    $region19: #{tpu_custom_call.1} parent=1 // pred_check_branch
      %20 = sbr.rel (0) target = $region21
    $region20: #{tpu_custom_call.1} parent=1 // pred_region
      _
    $region21: #{tpu_custom_call.1} parent=1 // pred_fallthru
      _
    %v22 = vld [vmem:[%s0] sm:$0xf]
    %v23 = vld [vmem:[%s2] sm:$0xf]
    %v24 = vld [vmem:[%s2 + $0x4] sm:$0xf]
    %v25 = vld [vmem:[%s2 + $0x8] sm:$0xf]
    %v26 = vld [vmem:[%s2 + $0xc] sm:$0xf]
    %v27 = vld [vmem:[%s1] sm:$0xf]
    %v28 = vld [vmem:[%s3] sm:$0xf]
    %v29 = vld [vmem:[%s3 + $0x4] sm:$0xf]
    %v30 = vld [vmem:[%s3 + $0x8] sm:$0xf]
    %v31 = vld [vmem:[%s3 + $0xc] sm:$0xf]
    %v32 = vld [vmem:[%s3 + $0x10] sm:$0xf]
    %v33 = vld [vmem:[%s3 + $0x14] sm:$0xf]
    %v34 = vld [vmem:[%s3 + $0x18] sm:$0xf]
    %v35 = vld [vmem:[%s3 + $0x1c] sm:$0xf]
    %v44 = vunpack.c.l.b16 %v28
    %v45 = vunpack.c.l.b16 %v29
    %v46 = vunpack.c.l.b16 %v30
    %v47 = vunpack.c.l.b16 %v31
    %v48 = vunpack.c.l.b16 %v32
    %v49 = vunpack.c.l.b16 %v33
    %v50 = vunpack.c.l.b16 %v34
    %v51 = vunpack.c.l.b16 %v35
    %v52 = vpack.c.b16 %v45, %v44
    %v53 = vpack.c.b16 %v47, %v46
    %v54 = vpack.c.b16 %v49, %v48
    %v55 = vpack.c.b16 %v51, %v50
    %vm60 = vcmask 523264
    %v62 = vsel %vm60, %v27, 0
    %64 = vmatprep.subr.bf16.mxu0 0
    %65 = vmatpush1.bf16.msra.mxu0 %v52
    %66 = vmatprep.subr.bf16.mxu0 0
    %67 = vmatpush1.bf16.msra.mxu0 %v53
    %68 = vmatprep.subr.bf16.mxu0 0
    %69 = vmatpush1.bf16.msra.mxu0 %v54
    %70 = vmatprep.subr.bf16.mxu0 0
    %71 = vmatpush1.bf16.msra.mxu0 %v55
    %72 = vmatprep.subr.bf16.mxu0 0
    %73 = vmatpush1.bf16.msra.mxu0 0
    %74 = vmatprep.subr.bf16.mxu0 0
    %75 = vmatpush1.bf16.msra.mxu0 0
    %76 = vmatprep.subr.bf16.mxu0 0
    %77 = vmatpush1.bf16.msra.mxu0 0
    %78 = vmatprep.subr.bf16.mxu0 0
    %79 = vmatpush1.bf16.msra.mxu0 0
    %80 = vmatprep.subr.bf16.mxu0 0
    %81 = vmatpush1.bf16.msra.mxu0 0
    %82 = vmatprep.subr.bf16.mxu0 0
    %83 = vmatpush1.bf16.msra.mxu0 0
    %84 = vmatprep.subr.bf16.mxu0 0
    %85 = vmatpush1.bf16.msra.mxu0 0
    %86 = vmatprep.subr.bf16.mxu0 0
    %87 = vmatpush1.bf16.msra.mxu0 0
    %88 = vmatprep.subr.bf16.mxu0 0
    %89 = vmatpush1.bf16.msra.mxu0 0
    %90 = vmatprep.subr.bf16.mxu0 0
    %91 = vmatpush1.bf16.msra.mxu0 0
    %92 = vmatprep.subr.bf16.mxu0 0
    %93 = vmatpush1.bf16.msra.mxu0 0
    %94 = vmatprep.subr.bf16.mxu0 0
    %95 = vmatpush1.bf16.msra.mxu0 0
    %96 = vmatprep.mubr.bf16.mxu0 0
    %97 = vmatmul.mubr.bf16.gmra.mrb[0].mxu0 %v62
    %v98 = vpop.f32.mrb[0].mxu0
    %v99 = vadd.f32 0.0, %v98
    %v100 = vpop.f32.mrb[0].mxu0
    %v101 = vpop.f32.mrb[0].mxu0
    %v102 = vpop.f32.mrb[0].mxu0
    %103 = vdwg.mxu0
    %v108 = vunpack.c.l.b16 %v23
    %v109 = vunpack.c.l.b16 %v24
    %v110 = vunpack.c.l.b16 %v25
    %v111 = vunpack.c.l.b16 %v26
    %v112 = vpack.c.b16 %v109, %v108
    %v113 = vpack.c.b16 %v111, %v110
    %vm116 = vcmask 261120
    %v118 = vsel %vm116, %v22, 0
    %120 = vmatprep.subr.bf16.mxu0 0
    %121 = vmatpush1.bf16.msra.mxu0 %v112
    %122 = vmatprep.subr.bf16.mxu0 0
    %123 = vmatpush1.bf16.msra.mxu0 %v113
    %124 = vmatprep.subr.bf16.mxu0 0
    %125 = vmatpush1.bf16.msra.mxu0 0
    %126 = vmatprep.subr.bf16.mxu0 0
    %127 = vmatpush1.bf16.msra.mxu0 0
    %128 = vmatprep.subr.bf16.mxu0 0
    %129 = vmatpush1.bf16.msra.mxu0 0
    %130 = vmatprep.subr.bf16.mxu0 0
    %131 = vmatpush1.bf16.msra.mxu0 0
    %132 = vmatprep.subr.bf16.mxu0 0
    %133 = vmatpush1.bf16.msra.mxu0 0
    %134 = vmatprep.subr.bf16.mxu0 0
    %135 = vmatpush1.bf16.msra.mxu0 0
    %136 = vmatprep.subr.bf16.mxu0 0
    %137 = vmatpush1.bf16.msra.mxu0 0
    %138 = vmatprep.subr.bf16.mxu0 0
    %139 = vmatpush1.bf16.msra.mxu0 0
    %140 = vmatprep.subr.bf16.mxu0 0
    %141 = vmatpush1.bf16.msra.mxu0 0
    %142 = vmatprep.subr.bf16.mxu0 0
    %143 = vmatpush1.bf16.msra.mxu0 0
    %144 = vmatprep.subr.bf16.mxu0 0
    %145 = vmatpush1.bf16.msra.mxu0 0
    %146 = vmatprep.subr.bf16.mxu0 0
    %147 = vmatpush1.bf16.msra.mxu0 0
    %148 = vmatprep.subr.bf16.mxu0 0
    %149 = vmatpush1.bf16.msra.mxu0 0
    %150 = vmatprep.subr.bf16.mxu0 0
    %151 = vmatpush1.bf16.msra.mxu0 0
    %152 = vmatprep.mubr.bf16.mxu0 0
    %153 = vmatmul.mubr.bf16.gmra.mrb[0].mxu0 %v118
    %v154 = vpop.f32.mrb[0].mxu0
    %v155 = vadd.f32 %v99, %v154
    %v156 = vpop.f32.mrb[0].mxu0
    %v157 = vpop.f32.mrb[0].mxu0
    %v158 = vpop.f32.mrb[0].mxu0
    %159 = vdwg.mxu0
    %v160 = vld [vmem:[%s4] sm:$0x1]
    %v162 = vlaneseq
    %v163 = vshrl.u32 %v162, 7
    %v164 = vsub.s32 0, %v163
    %v165 = vrot.slane %v160, %v164
    %v167 = vadd.f32 %v155, %v165
    %v168 = vmax.f32 %v167, 0.0
    %169 = vst.msk [vmem:[#allocation2] sm:$0xff] %vm116, %v168
    // Predicated region
    $region22: #{tpu_custom_call.1} parent=1 // pred_check
      _
    $region23: #{tpu_custom_call.1} parent=1 // pred_check_branch
      %171 = sbr.rel (0) target = $region25
    $region24: #{tpu_custom_call.1} parent=1 // pred_region
      %s173 = ssub.s32 128, 128
      %174 = vsyncadd [#allocation3], %s173
      %s176 = sshll.u32 [#allocation2], 4
      %s177 = int_to_ptr.vmem [resolvable:$true] %s176
      %179 = dma.vmem_to_hbm [thread:$0]  %s177, 128, %s5, [#allocation3]
    $region25: #{tpu_custom_call.1} parent=1 // pred_fallthru
      _
    // Predicated region
    $region26: #{tpu_custom_call.1} parent=1 // pred_check
      _
    $region27: #{tpu_custom_call.1} parent=1 // pred_check_branch
      %181 = sbr.rel (0) target = $region29
    $region28: #{tpu_custom_call.1} parent=1 // pred_region
      %182 = dma.done [#allocation3], 128
    $region29: #{tpu_custom_call.1} parent=1 // pred_fallthru
      _
    %183 = vsyncpa [#allocation3], 1

</llo_original>
